<compile_context>
chip_gen: v5e
topology: v5e:2x2
jax: 0.10.0
libtpu: 0.0.40
codegen_flags: <defaults>
</compile_context>

<pallas_src>
import jax
import jax.numpy as jnp
from jax import lax
from jax.experimental import pallas as pl
from jax.experimental.pallas import tpu as pltpu

DIM = 1              # `dim` in the reference module
EMBED = 16           # `embedding_size` in the reference module
_MAX_LANE_TILE = 512 # sequence (lane) tile; safe on v5e/v6e/v7x VMEM budgets
_INV_SQRT_E = 1.0 / (EMBED ** 0.5)   # 0.25 exactly


def _make_kernel(n, tn, needs_mask):
    """Build the kernel for a given (static) sequence length / lane tile."""

    def kernel(x_ref, xlast_ref, w_ref, b_ref, o_ref, m_sc, l_sc, acc_sc):
        step = pl.program_id(0)

        @pl.when(step == 0)
        def _init():
            m_sc[...] = jnp.full_like(m_sc, -jnp.inf)
            l_sc[...] = jnp.zeros_like(l_sc)
            acc_sc[...] = jnp.zeros_like(acc_sc)

        w = w_ref[...]            # (3E, 1)  [wq; wk; wv]
        b = b_ref[...]            # (3E, 1)  [bq; bk; bv]
        x_row = x_ref[...]        # (1, tn)  sequence values on lanes
        x_last = xlast_ref[...]   # (1, 1)

        # Last-row query (the only one that survives the reference's loop bug),
        # pre-scaled by 1/sqrt(EMBED): (E, 1).
        q = (w[0:EMBED] * x_last + b[0:EMBED]) * jnp.float32(_INV_SQRT_E)

        # Fused K/V linear for this lane tile: (2E, tn).
        kv = w[EMBED:3 * EMBED] * x_row + b[EMBED:3 * EMBED]
        k_t = kv[0:EMBED, :]              # (E, tn)
        v_t = kv[EMBED:2 * EMBED, :]      # (E, tn)

        # scores[j] = q_last . K_j  (already scaled): reduce over sublanes.
        s = jnp.sum(q * k_t, axis=0, keepdims=True)        # (1, tn)
        if needs_mask:
            lane = lax.broadcasted_iota(jnp.int32, (1, tn), 1) + step * tn
            s = jnp.where(lane < n, s, jnp.float32(-jnp.inf))

        # Online softmax (running max / sum / weighted-V).
        m_prev = m_sc[...]
        m_new = jnp.maximum(m_prev, jnp.max(s, axis=1, keepdims=True))
        alpha = jnp.exp(m_prev - m_new)
        p = jnp.exp(s - m_new)                              # (1, tn)
        l_sc[...] = alpha * l_sc[...] + jnp.sum(p, axis=1, keepdims=True)
        acc_sc[...] = alpha * acc_sc[...] + jnp.sum(v_t * p, axis=1, keepdims=True)
        m_sc[...] = m_new

        @pl.when(step == pl.num_programs(0) - 1)
        def _finalize():
            inv_l = pl.reciprocal(l_sc[...], approx=False)  # EUP path, exact
            o_ref[...] = (acc_sc[...] * inv_l).astype(o_ref.dtype)

    return kernel


def self_attention_header(x, wq, bq, wk, bk, wv, bv):
    """x: (n, DIM) f32; wq/wk/wv: (EMBED, DIM); bq/bk/bv: (EMBED,).

    Returns (n, EMBED) f32, matching the (buggy) reference forward.
    """
    n = x.shape[0]

    # Lane-dense sequence layout + fused parameter refs (arg prep only).
    x_row = x.reshape(1, n).astype(jnp.float32)              # (1, n)
    x_last = x_row[:, n - 1:n]                               # (1, 1)
    w_all = jnp.concatenate([wq, wk, wv], axis=0).reshape(3 * EMBED, 1).astype(jnp.float32)
    b_all = jnp.concatenate([bq, bk, bv], axis=0).reshape(3 * EMBED, 1).astype(jnp.float32)

    if n <= _MAX_LANE_TILE:
        tn, n_pad = n, n                                     # single full-extent tile
    else:
        tn = _MAX_LANE_TILE
        n_pad = pl.cdiv(n, tn) * tn
        x_row = jnp.pad(x_row, ((0, 0), (0, n_pad - n)))     # padded lanes are masked
    grid = (n_pad // tn,)
    needs_mask = n_pad != n

    row_col = pl.pallas_call(
        _make_kernel(n, tn, needs_mask),
        out_shape=jax.ShapeDtypeStruct((EMBED, 1), jnp.float32),
        grid=grid,
        in_specs=[
            pl.BlockSpec((1, tn), lambda s: (0, s)),          # x (sequence on lanes)
            pl.BlockSpec((1, 1), lambda s: (0, 0)),           # x_last
            pl.BlockSpec((3 * EMBED, 1), lambda s: (0, 0)),   # fused weights
            pl.BlockSpec((3 * EMBED, 1), lambda s: (0, 0)),   # fused biases
        ],
        out_specs=pl.BlockSpec((EMBED, 1), lambda s: (0, 0)),
        scratch_shapes=[
            pltpu.VMEM((1, 1), jnp.float32),       # running max m
            pltpu.VMEM((1, 1), jnp.float32),       # running sum l
            pltpu.VMEM((EMBED, 1), jnp.float32),   # running weighted-V acc
        ],
        compiler_params=pltpu.CompilerParams(
            dimension_semantics=("arbitrary",),
        ),
    )(x_row, x_last, w_all, b_all)                           # (EMBED, 1)

    # Zero-fill everywhere except the single surviving row (outside the kernel).
    return jnp.zeros((n, EMBED), jnp.float32).at[n - 1, :].set(row_col[:, 0])


def _reference_jax(x, wq, bq, wk, bk, wv, bv):
    """Pure-JAX replica of the (buggy) PyTorch forward, for verification."""
    n = x.shape[0]
    q = x @ wq.T + bq
    k = x @ wk.T + bk
    v = x @ wv.T + bv
    scores = (k @ q[-1]) / jnp.sqrt(jnp.float32(EMBED))        # (n,)
    p = jax.nn.softmax(scores, axis=0)
    value = (p[:, None] * v).sum(axis=0)                       # (E,)
    out = jnp.zeros((n, EMBED), jnp.float32)
    return out.at[n - 1, :].set(value)


if __name__ == "__main__":
    key = jax.random.PRNGKey(0)
    k_x, k_wq, k_bq, k_wk, k_bk, k_wv, k_bv, k_x2 = jax.random.split(key, 8)

    n = 8  # sequence length (number of scalar tokens)
    x = jax.random.normal(k_x, (n, DIM), jnp.float32)

    # deterministic parameter init (uniform in +-1/sqrt(fan_in)=+-1, like nn.Linear default)
    wq = jax.random.uniform(k_wq, (EMBED, DIM), jnp.float32, -1.0, 1.0)
    bq = jax.random.uniform(k_bq, (EMBED,), jnp.float32, -1.0, 1.0)
    wk = jax.random.uniform(k_wk, (EMBED, DIM), jnp.float32, -1.0, 1.0)
    bk = jax.random.uniform(k_bk, (EMBED,), jnp.float32, -1.0, 1.0)
    wv = jax.random.uniform(k_wv, (EMBED, DIM), jnp.float32, -1.0, 1.0)
    bv = jax.random.uniform(k_bv, (EMBED,), jnp.float32, -1.0, 1.0)

    out = jax.block_until_ready(self_attention_header(x, wq, bq, wk, bk, wv, bv))
    ref = _reference_jax(x, wq, bq, wk, bk, wv, bv)
    assert out.shape == (n, EMBED) and out.dtype == jnp.float32
    assert jnp.allclose(out, ref, atol=1e-5, rtol=1e-5), (out[-1], ref[-1])

    # Larger sequence: exercises the lane-tiled online-softmax path + tail mask.
    n2 = 1000
    x2 = jax.random.normal(k_x2, (n2, DIM), jnp.float32)
    out2 = jax.block_until_ready(self_attention_header(x2, wq, bq, wk, bk, wv, bv))
    ref2 = _reference_jax(x2, wq, bq, wk, bk, wv, bv)
    assert out2.shape == (n2, EMBED)
    assert jnp.allclose(out2, ref2, atol=1e-4, rtol=1e-4), (out2[-1], ref2[-1])

    print("KERNEL_OK")
</pallas_src>

<mosaic_0001>
module attributes {stable_mosaic.version = 11 : i64} {
  func.func @kernel(%arg0: i32, %arg1: memref<1x8xf32, #tpu.memory_space<vmem>>, %arg2: memref<1x1xf32, #tpu.memory_space<vmem>>, %arg3: memref<48x1xf32, #tpu.memory_space<vmem>>, %arg4: memref<48x1xf32, #tpu.memory_space<vmem>>, %arg5: memref<16x1xf32, #tpu.memory_space<vmem>>, %arg6: memref<1x1xf32, #tpu.memory_space<vmem>>, %arg7: memref<1x1xf32, #tpu.memory_space<vmem>>, %arg8: memref<16x1xf32, #tpu.memory_space<vmem>>) attributes {dimension_semantics = [#tpu.dimension_semantics<arbitrary>], iteration_bounds = array<i64: 1>, scalar_prefetch = 0 : i64, scratch_operands = 3 : i64, tpu.core_type = #tpu.core_type<tc>, window_params = [{transform_indices = @transform_0, window_bounds = array<i64: 1, 8>}, {pipeline_mode = #tpu.pipeline_mode<synchronous>, transform_indices = @transform_1, window_bounds = array<i64: 1, 1>}, {pipeline_mode = #tpu.pipeline_mode<synchronous>, transform_indices = @transform_2, window_bounds = array<i64: 48, 1>}, {pipeline_mode = #tpu.pipeline_mode<synchronous>, transform_indices = @transform_3, window_bounds = array<i64: 48, 1>}, {pipeline_mode = #tpu.pipeline_mode<synchronous>, transform_indices = @transform_4, window_bounds = array<i64: 16, 1>}]} {
    %c0_i32 = arith.constant 0 : i32
    %0 = arith.cmpi eq, %arg0, %c0_i32 : i32
    %1 = arith.extui %0 : i1 to i32
    %c0_i32_0 = arith.constant 0 : i32
    %2 = arith.cmpi ne, %1, %c0_i32_0 : i32
    scf.if %2 {
      %cst_26 = arith.constant 0xFF800000 : f32
      %55 = vector.broadcast %cst_26 : f32 to vector<1x1xf32>
      %c0_27 = arith.constant 0 : index
      %c0_28 = arith.constant 0 : index
      %56 = vector.load %arg6[%c0_27, %c0_28] : memref<1x1xf32, #tpu.memory_space<vmem>>, vector<1x1xf32>
      tpu.vector_store %arg6[%c0_27, %c0_28], %55 {strides = array<i32>} : memref<1x1xf32, #tpu.memory_space<vmem>>, vector<1x1xf32>,
      %cst_29 = arith.constant 0.000000e+00 : f32
      %57 = vector.broadcast %cst_29 : f32 to vector<1x1xf32>
      %c0_30 = arith.constant 0 : index
      %c0_31 = arith.constant 0 : index
      %58 = vector.load %arg7[%c0_30, %c0_31] : memref<1x1xf32, #tpu.memory_space<vmem>>, vector<1x1xf32>
      tpu.vector_store %arg7[%c0_30, %c0_31], %57 {strides = array<i32>} : memref<1x1xf32, #tpu.memory_space<vmem>>, vector<1x1xf32>,
      %cst_32 = arith.constant 0.000000e+00 : f32
      %59 = vector.broadcast %cst_32 : f32 to vector<16x1xf32>
      %c0_33 = arith.constant 0 : index
      %c0_34 = arith.constant 0 : index
      %60 = vector.load %arg8[%c0_33, %c0_34] : memref<16x1xf32, #tpu.memory_space<vmem>>, vector<16x1xf32>
      tpu.vector_store %arg8[%c0_33, %c0_34], %59 {strides = array<i32>} : memref<16x1xf32, #tpu.memory_space<vmem>>, vector<16x1xf32>,
    } else {
    }
    %c0 = arith.constant 0 : index
    %c0_1 = arith.constant 0 : index
    %3 = vector.load %arg3[%c0, %c0_1] : memref<48x1xf32, #tpu.memory_space<vmem>>, vector<48x1xf32>
    %c0_2 = arith.constant 0 : index
    %c0_3 = arith.constant 0 : index
    %4 = vector.load %arg4[%c0_2, %c0_3] : memref<48x1xf32, #tpu.memory_space<vmem>>, vector<48x1xf32>
    %c0_4 = arith.constant 0 : index
    %c0_5 = arith.constant 0 : index
    %5 = vector.load %arg1[%c0_4, %c0_5] : memref<1x8xf32, #tpu.memory_space<vmem>>, vector<1x8xf32>
    %c0_6 = arith.constant 0 : index
    %c0_7 = arith.constant 0 : index
    %6 = vector.load %arg2[%c0_6, %c0_7] : memref<1x1xf32, #tpu.memory_space<vmem>>, vector<1x1xf32>
    %7 = vector.extract_strided_slice %3 {offsets = [0, 0], sizes = [16, 1], strides = [1, 1]} : vector<48x1xf32> to vector<16x1xf32>
    %8 = vector.broadcast %6 : vector<1x1xf32> to vector<16x1xf32>
    %9 = arith.mulf %7, %8 : vector<16x1xf32>
    %10 = vector.extract_strided_slice %4 {offsets = [0, 0], sizes = [16, 1], strides = [1, 1]} : vector<48x1xf32> to vector<16x1xf32>
    %11 = arith.addf %9, %10 : vector<16x1xf32>
    %cst = arith.constant 2.500000e-01 : f32
    %12 = vector.broadcast %cst : f32 to vector<16x1xf32>
    %13 = arith.mulf %11, %12 : vector<16x1xf32>
    %14 = vector.extract_strided_slice %3 {offsets = [16, 0], sizes = [32, 1], strides = [1, 1]} : vector<48x1xf32> to vector<32x1xf32>
    %15 = vector.broadcast %14 : vector<32x1xf32> to vector<32x8xf32>
    %16 = vector.broadcast %5 : vector<1x8xf32> to vector<32x8xf32>
    %17 = arith.mulf %15, %16 : vector<32x8xf32>
    %18 = vector.extract_strided_slice %4 {offsets = [16, 0], sizes = [32, 1], strides = [1, 1]} : vector<48x1xf32> to vector<32x1xf32>
    %19 = vector.broadcast %18 : vector<32x1xf32> to vector<32x8xf32>
    %20 = arith.addf %17, %19 : vector<32x8xf32>
    %21 = vector.extract_strided_slice %20 {offsets = [0, 0], sizes = [16, 8], strides = [1, 1]} : vector<32x8xf32> to vector<16x8xf32>
    %22 = vector.extract_strided_slice %20 {offsets = [16, 0], sizes = [16, 8], strides = [1, 1]} : vector<32x8xf32> to vector<16x8xf32>
    %23 = vector.broadcast %13 : vector<16x1xf32> to vector<16x8xf32>
    %24 = arith.mulf %23, %21 : vector<16x8xf32>
    %cst_8 = arith.constant dense<0.000000e+00> : vector<8xf32>
    %25 = vector.multi_reduction <add>, %24, %cst_8 [0] : vector<16x8xf32> to vector<8xf32>
    %26 = vector.shape_cast %25 : vector<8xf32> to vector<1x8xf32>
    %c0_9 = arith.constant 0 : index
    %c0_10 = arith.constant 0 : index
    %27 = vector.load %arg6[%c0_9, %c0_10] : memref<1x1xf32, #tpu.memory_space<vmem>>, vector<1x1xf32>
    %cst_11 = arith.constant dense<0xFF800000> : vector<1xf32>
    %28 = vector.multi_reduction <maximumf>, %26, %cst_11 [1] : vector<1x8xf32> to vector<1xf32>
    %29 = vector.shape_cast %28 : vector<1xf32> to vector<1x1xf32>
    %30 = arith.maximumf %27, %29 : vector<1x1xf32>
    %31 = arith.subf %27, %30 : vector<1x1xf32>
    %32 = math.exp %31 : vector<1x1xf32>
    %33 = vector.broadcast %30 : vector<1x1xf32> to vector<1x8xf32>
    %34 = arith.subf %26, %33 : vector<1x8xf32>
    %35 = math.exp %34 : vector<1x8xf32>
    %c0_12 = arith.constant 0 : index
    %c0_13 = arith.constant 0 : index
    %36 = vector.load %arg7[%c0_12, %c0_13] : memref<1x1xf32, #tpu.memory_space<vmem>>, vector<1x1xf32>
    %37 = arith.mulf %32, %36 : vector<1x1xf32>
    %cst_14 = arith.constant dense<0.000000e+00> : vector<1xf32>
    %38 = vector.multi_reduction <add>, %35, %cst_14 [1] : vector<1x8xf32> to vector<1xf32>
    %39 = vector.shape_cast %38 : vector<1xf32> to vector<1x1xf32>
    %40 = arith.addf %37, %39 : vector<1x1xf32>
    %c0_15 = arith.constant 0 : index
    %c0_16 = arith.constant 0 : index
    %41 = vector.load %arg7[%c0_15, %c0_16] : memref<1x1xf32, #tpu.memory_space<vmem>>, vector<1x1xf32>
    tpu.vector_store %arg7[%c0_15, %c0_16], %40 {strides = array<i32>} : memref<1x1xf32, #tpu.memory_space<vmem>>, vector<1x1xf32>,
    %c0_17 = arith.constant 0 : index
    %c0_18 = arith.constant 0 : index
    %42 = vector.load %arg8[%c0_17, %c0_18] : memref<16x1xf32, #tpu.memory_space<vmem>>, vector<16x1xf32>
    %43 = vector.broadcast %32 : vector<1x1xf32> to vector<16x1xf32>
    %44 = arith.mulf %43, %42 : vector<16x1xf32>
    %45 = vector.broadcast %35 : vector<1x8xf32> to vector<16x8xf32>
    %46 = arith.mulf %22, %45 : vector<16x8xf32>
    %cst_19 = arith.constant dense<0.000000e+00> : vector<16xf32>
    %47 = vector.multi_reduction <add>, %46, %cst_19 [1] : vector<16x8xf32> to vector<16xf32>
    %48 = vector.shape_cast %47 : vector<16xf32> to vector<16x1xf32>
    %49 = arith.addf %44, %48 : vector<16x1xf32>
    %c0_20 = arith.constant 0 : index
    %c0_21 = arith.constant 0 : index
    %50 = vector.load %arg8[%c0_20, %c0_21] : memref<16x1xf32, #tpu.memory_space<vmem>>, vector<16x1xf32>
    tpu.vector_store %arg8[%c0_20, %c0_21], %49 {strides = array<i32>} : memref<16x1xf32, #tpu.memory_space<vmem>>, vector<16x1xf32>,
    %c0_22 = arith.constant 0 : index
    %c0_23 = arith.constant 0 : index
    %51 = vector.load %arg6[%c0_22, %c0_23] : memref<1x1xf32, #tpu.memory_space<vmem>>, vector<1x1xf32>
    tpu.vector_store %arg6[%c0_22, %c0_23], %30 {strides = array<i32>} : memref<1x1xf32, #tpu.memory_space<vmem>>, vector<1x1xf32>,
    %c0_i32_24 = arith.constant 0 : i32
    %52 = arith.cmpi eq, %arg0, %c0_i32_24 : i32
    %53 = arith.extui %52 : i1 to i32
    %c0_i32_25 = arith.constant 0 : i32
    %54 = arith.cmpi ne, %53, %c0_i32_25 : i32
    scf.if %54 {
      %c0_26 = arith.constant 0 : index
      %c0_27 = arith.constant 0 : index
      %55 = vector.load %arg7[%c0_26, %c0_27] : memref<1x1xf32, #tpu.memory_space<vmem>>, vector<1x1xf32>
      %56 = tpu.reciprocal %55 : vector<1x1xf32> -> vector<1x1xf32>
      %c0_28 = arith.constant 0 : index
      %c0_29 = arith.constant 0 : index
      %57 = vector.load %arg8[%c0_28, %c0_29] : memref<16x1xf32, #tpu.memory_space<vmem>>, vector<16x1xf32>
      %58 = vector.broadcast %56 : vector<1x1xf32> to vector<16x1xf32>
      %59 = arith.mulf %57, %58 : vector<16x1xf32>
      %c0_30 = arith.constant 0 : index
      %c0_31 = arith.constant 0 : index
      %60 = vector.load %arg5[%c0_30, %c0_31] : memref<16x1xf32, #tpu.memory_space<vmem>>, vector<16x1xf32>
      tpu.vector_store %arg5[%c0_30, %c0_31], %59 {strides = array<i32>} : memref<16x1xf32, #tpu.memory_space<vmem>>, vector<16x1xf32>,
    } else {
    }
    return
  }
  func.func @transform_0(%arg0: i32) -> (i32, i32) {
    %c0_i32 = arith.constant 0 : i32
    %c0_i32_0 = arith.constant 0 : i32
    return %c0_i32, %arg0 : i32, i32
  }
  func.func @transform_1(%arg0: i32) -> (i32, i32) {
    %c0_i32 = arith.constant 0 : i32
    %c0_i32_0 = arith.constant 0 : i32
    %c0_i32_1 = arith.constant 0 : i32
    return %c0_i32, %c0_i32_0 : i32, i32
  }
  func.func @transform_2(%arg0: i32) -> (i32, i32) {
    %c0_i32 = arith.constant 0 : i32
    %c0_i32_0 = arith.constant 0 : i32
    %c0_i32_1 = arith.constant 0 : i32
    return %c0_i32, %c0_i32_0 : i32, i32
  }
  func.func @transform_3(%arg0: i32) -> (i32, i32) {
    %c0_i32 = arith.constant 0 : i32
    %c0_i32_0 = arith.constant 0 : i32
    %c0_i32_1 = arith.constant 0 : i32
    return %c0_i32, %c0_i32_0 : i32, i32
  }
  func.func @transform_4(%arg0: i32) -> (i32, i32) {
    %c0_i32 = arith.constant 0 : i32
    %c0_i32_0 = arith.constant 0 : i32
    %c0_i32_1 = arith.constant 0 : i32
    return %c0_i32, %c0_i32_0 : i32, i32
  }
}

</mosaic_0001>

<llo_original>
// kernel: tpu_custom_call.1
$region0: #{tpu_custom_call.1}
  #allocation0 [shape = 'u32[]', space=smem, size = 0x4, offset = 0x4, fixed_abs, tag = 'smem constant byte address 0x4 - core index']
  #allocation1 [shape = 'u32[72,128]{1,0:T(1,128)}', space=vmem, size = 0x9000, scoped, tag = 'internal scratch']
  #allocation2 [shape = 'f32[1,1]{1,0:T(1,128)}', space=vmem, size = 0x200, scoped, tag = 'scratch operand']
  #allocation3 [shape = 'f32[1,1]{1,0:T(1,128)}', space=vmem, size = 0x200, scoped, tag = 'scratch operand']
  #allocation4 [shape = 'f32[16,1]{1,0:T(8,128)}', space=vmem, size = 0x2000, scoped, tag = 'scratch operand']
  #allocation5 [shape = 'f32[1,1]{1,0:T(1,128)S(1)}', space=vmem, size = 0x200, scoped, tag = 'scoped memory for tpu_custom_call.1']
  %s0 = inlined_call_operand.vmem [shape: f32[1,8], index: 0, kind: input, shape index: {}]
  %s1 = inlined_call_operand.<no memory space> [shape: f32[1,1], index: 1, kind: input, shape index: {}]
  %s2 = inlined_call_operand.vmem [shape: f32[48,1], index: 2, kind: input, shape index: {}]
  %s3 = inlined_call_operand.vmem [shape: f32[48,1], index: 3, kind: input, shape index: {}]
  %s4 = inlined_call_operand.vmem [shape: f32[16,1], index: 4, kind: output, shape index: {}]
  %s5 = sld [smem:[#allocation0]]
  $region34: #{tpu_custom_call.1} parent=0
    _
  %s7 = ssub.s32 1, %s5
  %s8 = scalar_select 0, %s7, %s5
  %v9 = vstv %s1
  %10 = vst [vmem:[#allocation5] sm:$0x1] %v9
  // Predicated region
  $region2: #{tpu_custom_call.1} parent=0 // pred_check
    _
  $region3: #{tpu_custom_call.1} parent=0 // pred_check_branch
    %12 = sbr.rel (0) target = $region5
  $region4: #{tpu_custom_call.1} parent=0 // pred_region
    _
  $region5: #{tpu_custom_call.1} parent=0 // pred_fallthru
    _
  // Predicated region
  $region6: #{tpu_custom_call.1} parent=0 // pred_check
    _
  $region7: #{tpu_custom_call.1} parent=0 // pred_check_branch
    %14 = sbr.rel (0) target = $region9
  $region8: #{tpu_custom_call.1} parent=0 // pred_region
    _
  $region9: #{tpu_custom_call.1} parent=0 // pred_fallthru
    _
  // Predicated region
  $region10: #{tpu_custom_call.1} parent=0 // pred_check
    _
  $region11: #{tpu_custom_call.1} parent=0 // pred_check_branch
    %16 = sbr.rel (0) target = $region13
  $region12: #{tpu_custom_call.1} parent=0 // pred_region
    _
  $region13: #{tpu_custom_call.1} parent=0 // pred_fallthru
    _
  // Predicated region
  $region14: #{tpu_custom_call.1} parent=0 // pred_check
    _
  $region15: #{tpu_custom_call.1} parent=0 // pred_check_branch
    %18 = sbr.rel (0) target = $region17
  $region16: #{tpu_custom_call.1} parent=0 // pred_region
    _
  $region17: #{tpu_custom_call.1} parent=0 // pred_fallthru
    _
  %p19 = scmp.eq.s32.totalorder 0, 0
  // Predicated region
  $region18: #{tpu_custom_call.1} parent=0 // pred_check
    %p20 = pneg %p19
  $region19: #{tpu_custom_call.1} parent=0 // pred_check_branch
    %22 = sbr.rel (%p20) target = $region21
  $region20: #{tpu_custom_call.1} parent=0 // pred_region
    %vm23 = vcmask 0
    %24 = vst.msk [vmem:[#allocation2] sm:$0x1] %vm23, -inf
    %25 = vst.msk [vmem:[#allocation3] sm:$0x1] %vm23, 0.0
    %vm26 = vcmask 7168
    %27 = vst.msk [vmem:[#allocation4] sm:$0xff] %vm26, 0.0
    %28 = vst.msk [vmem:[#allocation4 + $0x8] sm:$0xff] %vm26, 0.0
  $region21: #{tpu_custom_call.1} parent=0 // pred_fallthru
    _
  %v29 = vld [vmem:[%s2] sm:$0xff]
  %v30 = vld [vmem:[%s2 + $0x8] sm:$0xff]
  %v31 = vld [vmem:[%s2 + $0x10] sm:$0xff]
  %v32 = vld [vmem:[%s2 + $0x18] sm:$0xff]
  %v33 = vld [vmem:[%s2 + $0x20] sm:$0xff]
  %v34 = vld [vmem:[%s2 + $0x28] sm:$0xff]
  %v35 = vld [vmem:[%s3] sm:$0xff]
  %v36 = vld [vmem:[%s3 + $0x8] sm:$0xff]
  %v37 = vld [vmem:[%s3 + $0x10] sm:$0xff]
  %v38 = vld [vmem:[%s3 + $0x18] sm:$0xff]
  %v39 = vld [vmem:[%s3 + $0x20] sm:$0xff]
  %v40 = vld [vmem:[%s3 + $0x28] sm:$0xff]
  %v41 = vld [vmem:[%s0] sm:$0x1]
  %v42 = vld [vmem:[#allocation5] sm:$0x1]
  %v44 = vperm.slane %v42, 0
  %v46 = vmul.f32 %v29, %v44
  %v47 = vmul.f32 %v30, %v44
  %v48 = vadd.f32 %v46, %v35
  %v49 = vadd.f32 %v47, %v36
  %v50 = vmul.f32 %v48, 0.25
  %v51 = vmul.f32 %v49, 0.25
  %53 = vset.pattern.permute.xlu0 0
  %54 = vperm.xlu0 %53, %v31
  %v55 = vpop.permute.xlu0 %54
  %58 = vset.pattern.permute.xlu0 0
  %59 = vperm.xlu0 %58, %v32
  %v60 = vpop.permute.xlu0 %59
  %63 = vset.pattern.permute.xlu0 0
  %64 = vperm.xlu0 %63, %v33
  %v65 = vpop.permute.xlu0 %64
  %68 = vset.pattern.permute.xlu0 0
  %69 = vperm.xlu0 %68, %v34
  %v70 = vpop.permute.xlu0 %69
  %v73 = vperm.slane %v41, 0
  %v75 = vmul.f32 %v55, %v73
  %v76 = vmul.f32 %v60, %v73
  %v77 = vmul.f32 %v65, %v73
  %v78 = vmul.f32 %v70, %v73
  %80 = vset.pattern.permute.xlu0 0
  %81 = vperm.xlu0 %80, %v37
  %v82 = vpop.permute.xlu0 %81
  %85 = vset.pattern.permute.xlu0 0
  %86 = vperm.xlu0 %85, %v38
  %v87 = vpop.permute.xlu0 %86
  %90 = vset.pattern.permute.xlu0 0
  %91 = vperm.xlu0 %90, %v39
  %v92 = vpop.permute.xlu0 %91
  %95 = vset.pattern.permute.xlu0 0
  %96 = vperm.xlu0 %95, %v40
  %v97 = vpop.permute.xlu0 %96
  %v99 = vadd.f32 %v75, %v82
  %v100 = vadd.f32 %v76, %v87
  %v101 = vadd.f32 %v77, %v92
  %v102 = vadd.f32 %v78, %v97
  %104 = vset.pattern.permute.xlu0 0
  %105 = vperm.xlu0 %104, %v50
  %v106 = vpop.permute.xlu0 %105
  %109 = vset.pattern.permute.xlu0 0
  %110 = vperm.xlu0 %109, %v51
  %v111 = vpop.permute.xlu0 %110
  %v113 = vmul.f32 %v106, %v99
  %v114 = vmul.f32 %v111, %v100
  %vm115 = vcmask 64512
  %v116 = vsel %vm115, %v113, 0.0
  %v117 = vsel %vm115, %v114, 0.0
  %v118 = vadd.f32 %v116, %v117
  %v119 = vrot.slane %v118, 4
  %v120 = vadd.f32 %v118, %v119
  %v121 = vrot.slane %v120, 2
  %v122 = vadd.f32 %v120, %v121
  %v123 = vrot.slane %v122, 1
  %v124 = vadd.f32 %v122, %v123
  %v125 = vld [vmem:[#allocation2] sm:$0x1]
  %v126 = vsel %vm115, %v124, -inf
  %127 = vmax.xlane.f32.xlu0 %v126
  %v128 = vpop.xlane.xlu0 %127
  %v129 = vmax.f32 %v125, %v128
  %v130 = vsub.f32 %v125, %v129
  %v131 = vmul.f32 %v130, 1.442695
  %v132 = vpow.pop %v131
  %134 = vset.pattern.permute.xlu0 0
  %135 = vperm.xlu0 %134, %v129
  %v136 = vpop.permute.xlu0 %135
  %v138 = vperm.slane %v136, 0
  %v139 = vsub.f32 %v124, %v138
  %v140 = vmul.f32 %v139, 1.442695
  %v141 = vpow.pop %v140
  %v142 = vld [vmem:[#allocation3] sm:$0x1]
  %v143 = vmul.f32 %v132, %v142
  %v144 = vsel %vm115, %v141, 0.0
  %145 = vadd.xlane.f32.xlu0 %v144
  %v146 = vpop.xlane.xlu0 %145
  %v147 = vadd.f32 %v143, %v146
  %vm148 = vcmask 0
  %149 = vst.msk [vmem:[#allocation3] sm:$0x1] %vm148, %v147
  %v150 = vld [vmem:[#allocation4] sm:$0xff]
  %v151 = vld [vmem:[#allocation4 + $0x8] sm:$0xff]
  %v153 = vperm.slane %v132, 0
  %v155 = vmul.f32 %v153, %v150
  %v156 = vmul.f32 %v153, %v151
  %v157 = vmul.f32 %v101, %v141
  %v158 = vmul.f32 %v102, %v141
  %v159 = vsel %vm115, %v157, 0.0
  %160 = vadd.xlane.f32.xlu0 %v159
  %v161 = vpop.xlane.xlu0 %160
  %v162 = vsel %vm115, %v158, 0.0
  %163 = vadd.xlane.f32.xlu0 %v162
  %v164 = vpop.xlane.xlu0 %163
  %v165 = vadd.f32 %v155, %v161
  %v166 = vadd.f32 %v156, %v164
  %vm167 = vcmask 7168
  %168 = vst.msk [vmem:[#allocation4] sm:$0xff] %vm167, %v165
  %169 = vst.msk [vmem:[#allocation4 + $0x8] sm:$0xff] %vm167, %v166
  %170 = vst.msk [vmem:[#allocation2] sm:$0x1] %vm148, %v129
  // Predicated region
  $region22: #{tpu_custom_call.1} parent=0 // pred_check
    %p171 = pneg %p19
  $region23: #{tpu_custom_call.1} parent=0 // pred_check_branch
    %173 = sbr.rel (%p171) target = $region25
  $region24: #{tpu_custom_call.1} parent=0 // pred_region
    %v174 = vld [vmem:[#allocation3] sm:$0x1]
    %v175 = vrcp.pop %v174
    %v176 = vmul.f32 %v174, %v175
    %v177 = vsub.f32 1.0, %v176
    %v178 = vmul.f32 %v175, %v177
    %v179 = vadd.f32 %v175, %v178
    %vm180 = vweird.f32 %v174
    %vm181 = vweird.f32 %v175
    %vm182 = vmor %vm180, %vm181
    %v183 = vsel %vm182, %v175, %v179
    %v184 = vand.u32 2147483647, %v174
    %vm185 = vcmp.eq.f32.partialorder %v184, 8.507059e+37
    %v186 = vand.u32 %v174, 2147483648
    %v187 = vor.u32 1.1754944e-38, %v186
    %v188 = vsel %vm185, %v187, %v183
    %v189 = vld [vmem:[#allocation4] sm:$0xff]
    %v190 = vld [vmem:[#allocation4 + $0x8] sm:$0xff]
    %v192 = vperm.slane %v188, 0
    %v194 = vmul.f32 %v189, %v192
    %v195 = vmul.f32 %v190, %v192
    %196 = vst.msk [vmem:[%s4] sm:$0xff] %vm167, %v194
    %197 = vst.msk [vmem:[%s4 + $0x8] sm:$0xff] %vm167, %v195
  $region25: #{tpu_custom_call.1} parent=0 // pred_fallthru
    _
  // Predicated region
  $region26: #{tpu_custom_call.1} parent=0 // pred_check
    _
  $region27: #{tpu_custom_call.1} parent=0 // pred_check_branch
    %199 = sbr.rel (0) target = $region29
  $region28: #{tpu_custom_call.1} parent=0 // pred_region
    _
  $region29: #{tpu_custom_call.1} parent=0 // pred_fallthru
    _
  // Predicated region
  $region30: #{tpu_custom_call.1} parent=0 // pred_check
    _
  $region31: #{tpu_custom_call.1} parent=0 // pred_check_branch
    %201 = sbr.rel (0) target = $region33
  $region32: #{tpu_custom_call.1} parent=0 // pred_region
    _
  $region33: #{tpu_custom_call.1} parent=0 // pred_fallthru
    _

</llo_original>
